<compile_context>
chip_gen: v7x
topology: tpu7x:2x2x1
jax: 0.10.0
libtpu: 0.0.40
codegen_flags: <defaults>
</compile_context>

<pallas_src>
import functools

import jax
import jax.numpy as jnp
from jax.experimental import pallas as pl
from jax.experimental.pallas import tpu as pltpu


def _round_up(x, m):
    return (x + m - 1) // m * m


def _joint_in_dims(joints_num, contact_joints):
    dims = []
    for i in range(joints_num):
        if i == 0:
            d = 7
        elif i in contact_joints:
            d = 13
        else:
            d = 12
        dims.append(d)
    return dims


def _joint_channel_indices(joints_num, contact_joints):
    """Channel indices of x[..., c] consumed by each joint, in the exact
    concatenation order of the PyTorch forward (root/ric/rot/vel + contact)."""
    J = joints_num
    off_ric = 4
    off_rot = off_ric + 3 * (J - 1)
    off_vel = off_rot + 6 * (J - 1)
    off_contact = off_vel + 3 * J
    idx = [list(range(0, 4)) + list(range(off_vel, off_vel + 3))]   # joint 0
    for i in range(1, J):
        idx.append(list(range(off_ric + 3 * (i - 1), off_ric + 3 * i))
                   + list(range(off_rot + 6 * (i - 1), off_rot + 6 * i))
                   + list(range(off_vel + 3 * i, off_vel + 3 * (i + 1))))
    # Only len(contact_joints) contact channels are consumed — same as the
    # PyTorch forward (remaining contact columns are simply unused).
    for cidx, jidx in enumerate(contact_joints):
        idx[jidx] = idx[jidx] + [off_contact + cidx]
    return idx


def _apply_activation(h, activation):
    if activation == "gelu":          # tanh approximation (TPU EUP tanh/exp)
        return jax.nn.gelu(h, approximate=True)
    if activation == "gelu_exact":    # PyTorch nn.GELU default (erf)
        return jax.nn.gelu(h, approximate=False)
    if activation == "relu":
        return jnp.maximum(h, 0.0)
    if activation == "silu":
        return h * jax.nn.sigmoid(h)
    raise ValueError(f"unsupported activation: {activation}")


# ----------------------------- Pallas kernel --------------------------------

def _fused_joint_mlp_kernel(x_ref, w1_ref, b1_ref, w2_ref, b2_ref, o_ref, *,
                            activation):
    """One row tile of the fused block-diagonal two-layer MLP.

    x_ref : (TN, D)     native f32 (cast to the weight dtype in-kernel)
    w1_ref: (D, J*L)    compute dtype; per-joint blocks scattered onto the
                        channel rows each joint consumes (permutation folded in)
    b1_ref: (1, J*L)    f32
    w2_ref: (J*L, J*L)  compute dtype, block-diagonal over joints
    b2_ref: (1, J*L)    f32
    o_ref : (TN, J*L)   f32 (or bf16 if downstream tolerates it)
    """
    x = x_ref[...].astype(w1_ref.dtype)       # in-kernel cast: hidden under DMA
    h = jnp.dot(x, w1_ref[...],
                preferred_element_type=jnp.float32) + b1_ref[...]
    h = _apply_activation(h, activation)       # f32 activation (v5e-safe)
    h = h.astype(w2_ref.dtype)                 # narrow for the second MXU pass
    y = jnp.dot(h, w2_ref[...],
                preferred_element_type=jnp.float32) + b2_ref[...]
    o_ref[...] = y.astype(o_ref.dtype)


def _default_row_tile(n_rows):
    # Aim for several grid steps (so the "parallel" row axis can be sharded
    # across v7x's two TensorCores and the ~0.35us/step overhead amortizes),
    # rows a multiple of 16 (bf16 sublane packing), capped at 2048 (bigger
    # DMAs for single-TC v5e/v6e; working set still tiny vs VMEM).
    tn = _round_up(max(1, pl.cdiv(n_rows, 8)), 16)
    return max(16, min(2048, tn))


def fused_mlp_pallas(x, w1, b1, w2, b2, *, activation="gelu",
                     out_dtype=jnp.float32, row_tile=None):
    """x: [N, D] native dtype; w1: [D, OUT], w2: [OUT, OUT] (compute dtype);
    b1/b2: [1, OUT] f32.  Returns [N, OUT] in out_dtype."""
    N, D = x.shape
    OUT = w1.shape[-1]
    assert w1.shape == (D, OUT) and w2.shape == (OUT, OUT)

    tn = row_tile if row_tile is not None else _default_row_tile(N)
    tn = max(16, _round_up(tn, 16))
    grid = (pl.cdiv(N, tn),)            # ragged last tile handled by Pallas

    x_sz = x.dtype.itemsize
    w_sz = w1.dtype.itemsize
    o_sz = jnp.dtype(out_dtype).itemsize
    d_pad = _round_up(D, 128)           # lane padding of the x tile in VMEM
    out_pad = _round_up(OUT, 128)
    # double-buffered x/out tiles + f32 intermediates + resident weights.
    vmem_need = (2 * tn * d_pad * x_sz
                 + 2 * tn * out_pad * o_sz
                 + 2 * tn * out_pad * 4
                 + 2 * (_round_up(D, 8) * out_pad + out_pad * out_pad) * w_sz
                 + 4 * out_pad * 4)
    vmem_limit = int(min(vmem_need + (8 << 20), 32 << 20))  # fits v7x scoped VMEM

    cost = pl.CostEstimate(
        flops=2 * N * OUT * (D + OUT),
        transcendentals=0 if activation == "relu" else N * OUT,
        bytes_accessed=(N * D * x_sz + N * OUT * o_sz
                        + (D * OUT + OUT * OUT) * w_sz + 2 * OUT * 4),
    )

    kernel = functools.partial(_fused_joint_mlp_kernel, activation=activation)
    return pl.pallas_call(
        kernel,
        out_shape=jax.ShapeDtypeStruct((N, OUT), out_dtype),
        grid_spec=pltpu.PrefetchScalarGridSpec(
            num_scalar_prefetch=0,
            grid=grid,
            in_specs=[
                pl.BlockSpec((tn, D), lambda n: (n, 0)),     # activations
                # Weights/biases are grid-invariant (index_map ignores n) and
                # stay VMEM-resident; they total ~100 KiB so default double
                # buffering is harmless.
                # TODO(synk): pipeline_mode=pl.Buffered(1) would single-buffer
                # them, but saves <100 KiB here so it is omitted for safety.
                pl.BlockSpec((D, OUT), lambda n: (0, 0)),    # W1
                pl.BlockSpec((1, OUT), lambda n: (0, 0)),    # b1
                pl.BlockSpec((OUT, OUT), lambda n: (0, 0)),  # W2
                pl.BlockSpec((1, OUT), lambda n: (0, 0)),    # b2
            ],
            out_specs=pl.BlockSpec((tn, OUT), lambda n: (n, 0)),
        ),
        compiler_params=pltpu.CompilerParams(
            dimension_semantics=("parallel",),
            vmem_limit_bytes=vmem_limit),
        cost_estimate=cost,
    )(x, w1, b1, w2, b2)


# ------------------------- parameter packing (one-time) ----------------------

def init_joint_params(key, joints_num, contact_joints, latent_dim):
    """Per-joint (W1, b1, W2, b2) with PyTorch-default-style uniform init."""
    params = []
    for d in _joint_in_dims(joints_num, contact_joints):
        key, k1, k2, k3, k4 = jax.random.split(key, 5)
        bound1 = 1.0 / jnp.sqrt(d)
        bound2 = 1.0 / jnp.sqrt(latent_dim)
        w1 = jax.random.uniform(k1, (d, latent_dim), jnp.float32,
                                -bound1, bound1)
        b1 = jax.random.uniform(k2, (latent_dim,), jnp.float32,
                                -bound1, bound1)
        w2 = jax.random.uniform(k3, (latent_dim, latent_dim), jnp.float32,
                                -bound2, bound2)
        b2 = jax.random.uniform(k4, (latent_dim,), jnp.float32,
                                -bound2, bound2)
        params.append((w1, b1, w2, b2))
    return params


def pack_block_diag_params(per_joint, joints_num, contact_joints, latent_dim,
                           pose_dim, compute_dtype=jnp.bfloat16):
    """Assemble the fused weights ONCE (outside the per-call jitted path).

    W1's rows follow x's native channel order — the split/cat permutation of
    the PyTorch forward is folded into this scatter — and its output columns
    are joint-major, so the kernel reads x directly and the final [B,T,J,L]
    is a free reshape.  Channels the module never consumes become zero rows.
    """
    ch_idx = _joint_channel_indices(joints_num, contact_joints)
    out = joints_num * latent_dim
    w1 = jnp.zeros((pose_dim, out), jnp.float32)
    w2 = jnp.zeros((out, out), jnp.float32)
    b1s, b2s = [], []
    for j, (w1j, b1j, w2j, b2j) in enumerate(per_joint):
        rows = jnp.asarray(ch_idx[j], dtype=jnp.int32)
        col = j * latent_dim
        w1 = w1.at[rows, col:col + latent_dim].set(w1j)
        w2 = w2.at[col:col + latent_dim, col:col + latent_dim].set(w2j)
        b1s.append(b1j)
        b2s.append(b2j)
    b1 = jnp.concatenate(b1s).reshape(1, out)
    b2 = jnp.concatenate(b2s).reshape(1, out)
    return (w1.astype(compute_dtype), b1, w2.astype(compute_dtype), b2)


# ------------------------------ forward (jitted) -----------------------------

def motion_encoder_forward(x, packed_params, *, joints_num, latent_dim,
                           activation="gelu", out_dtype=jnp.float32,
                           row_tile=None):
    """x: [B, T, pose_dim] (native f32).  Returns [B, T, J, latent_dim]."""
    B, T, D = x.shape
    w1, b1, w2, b2 = packed_params
    out = fused_mlp_pallas(x.reshape(B * T, D), w1, b1, w2, b2,
                           activation=activation, out_dtype=out_dtype,
                           row_tile=row_tile)               # [N, J*L]
    # Joint-major output columns => [B,T,J,L] is a free reshape (matches
    # torch.stack(out, dim=2)); no transpose / extra HBM round trip.
    return out.reshape(B, T, joints_num, latent_dim)


# ------------------------------ pure-JAX reference ---------------------------

def build_joint_feature_list(x, joints_num, contact_joints):
    """Split x=[B,T,D] exactly like the PyTorch forward."""
    B, T, D = x.shape
    J = joints_num
    sizes = [4, 3 * (J - 1), 6 * (J - 1), 3 * J, 4]
    assert sum(sizes) == D
    splits, acc = [], 0
    for s in sizes[:-1]:
        acc += s
        splits.append(acc)
    root, ric, rot, vel, contact = jnp.split(x, splits, axis=-1)
    ric = ric.reshape(B, T, J - 1, 3)
    rot = rot.reshape(B, T, J - 1, 6)
    vel = vel.reshape(B, T, J, 3)
    joints = [jnp.concatenate([root, vel[:, :, 0]], axis=-1)]
    for i in range(1, J):
        joints.append(jnp.concatenate(
            [ric[:, :, i - 1], rot[:, :, i - 1], vel[:, :, i]], axis=-1))
    for cidx, jidx in enumerate(contact_joints):
        joints[jidx] = jnp.concatenate(
            [joints[jidx], contact[:, :, cidx, None]], axis=-1)
    return joints


def motion_encoder_reference(x, per_joint_params, joints_num, contact_joints,
                             *, activation="gelu", compute_dtype=jnp.bfloat16):
    """Per-joint reference with the same compute-dtype casts as the kernel."""
    joints = build_joint_feature_list(x, joints_num, contact_joints)
    outs = []
    for j, (w1, b1, w2, b2) in enumerate(per_joint_params):
        f = joints[j].astype(compute_dtype)
        h = jnp.dot(f, w1.astype(compute_dtype),
                    preferred_element_type=jnp.float32) + b1
        h = _apply_activation(h, activation).astype(compute_dtype)
        y = jnp.dot(h, w2.astype(compute_dtype),
                    preferred_element_type=jnp.float32) + b2
        outs.append(y)
    return jnp.stack(outs, axis=2)


# ----------------------------------- main ------------------------------------

if __name__ == "__main__":
    # joints_num = (pose_dim + 1) // 12  =>  pose_dim = 12*J - 1
    J = 4
    POSE_DIM = 12 * J - 1            # 47 = 4 + 3*(J-1) + 6*(J-1) + 3*J + 4
    LATENT = 32                      # J*L = 128 output lanes -> dense stores
    CONTACT_JOINTS = (1, 3)          # consumes contact channels 0 and 1 only,
                                     # exactly like the PyTorch forward
    B, T = 2, 8
    # TODO(synk): opt.activation is unknown; tanh-approx GELU is used here.
    # Use activation="gelu_exact" for erf parity with PyTorch nn.GELU.
    ACT = "gelu"

    key = jax.random.PRNGKey(0)
    kx, kp = jax.random.split(key)
    x = jax.random.normal(kx, (B, T, POSE_DIM), dtype=jnp.float32)
    per_joint = init_joint_params(kp, J, CONTACT_JOINTS, LATENT)

    # Pack fused block-diagonal weights once, outside the jitted per-call path.
    packed = jax.block_until_ready(pack_block_diag_params(
        per_joint, J, CONTACT_JOINTS, LATENT, POSE_DIM,
        compute_dtype=jnp.bfloat16))

    # out_dtype=jnp.bfloat16 halves output HBM traffic if downstream tolerates
    # it; kept f32 here so the numerical self-check stays strict.
    fwd = jax.jit(functools.partial(
        motion_encoder_forward, joints_num=J, latent_dim=LATENT,
        activation=ACT, out_dtype=jnp.float32))
    out = jax.block_until_ready(fwd(x, packed))

    ref = motion_encoder_reference(x, per_joint, J, CONTACT_JOINTS,
                                   activation=ACT, compute_dtype=jnp.bfloat16)
    assert out.shape == (B, T, J, LATENT), out.shape
    max_err = float(jnp.max(jnp.abs(out - ref)))
    assert max_err < 1e-2, max_err

    print("KERNEL_OK")
</pallas_src>

<mosaic_0001>
module attributes {stable_mosaic.version = 11 : i64} {
  func.func @_fused_joint_mlp_kernel(%arg0: i32, %arg1: memref<16x47xf32, #tpu.memory_space<vmem>>, %arg2: memref<47x128xbf16, #tpu.memory_space<vmem>>, %arg3: memref<1x128xf32, #tpu.memory_space<vmem>>, %arg4: memref<128x128xbf16, #tpu.memory_space<vmem>>, %arg5: memref<1x128xf32, #tpu.memory_space<vmem>>, %arg6: memref<16x128xf32, #tpu.memory_space<vmem>>) attributes {dimension_semantics = [#tpu.dimension_semantics<parallel>], iteration_bounds = array<i64: 1>, scalar_prefetch = 0 : i64, scratch_operands = 0 : i64, tpu.core_type = #tpu.core_type<tc>, window_params = [{transform_indices = @transform_0, window_bounds = array<i64: 16, 47>}, {pipeline_mode = #tpu.pipeline_mode<synchronous>, transform_indices = @transform_1, window_bounds = array<i64: 47, 128>}, {pipeline_mode = #tpu.pipeline_mode<synchronous>, transform_indices = @transform_2, window_bounds = array<i64: 1, 128>}, {pipeline_mode = #tpu.pipeline_mode<synchronous>, transform_indices = @transform_3, window_bounds = array<i64: 128, 128>}, {pipeline_mode = #tpu.pipeline_mode<synchronous>, transform_indices = @transform_4, window_bounds = array<i64: 1, 128>}, {transform_indices = @transform_5, window_bounds = array<i64: 16, 128>}]} {
    %c0 = arith.constant 0 : index
    %c0_0 = arith.constant 0 : index
    %0 = vector.load %arg1[%c0, %c0_0] : memref<16x47xf32, #tpu.memory_space<vmem>>, vector<16x47xf32>
    %1 = arith.truncf %0 : vector<16x47xf32> to vector<16x47xbf16>
    %c0_1 = arith.constant 0 : index
    %c0_2 = arith.constant 0 : index
    %2 = vector.load %arg2[%c0_1, %c0_2] : memref<47x128xbf16, #tpu.memory_space<vmem>>, vector<47x128xbf16>
    %cst = arith.constant dense<0.000000e+00> : vector<16x128xf32>
    %3 = tpu.matmul %1, %2, %cst {dimension_numbers = #tpu.dot_dimension_numbers<[1], [0], [0], [1], [0, 0, 1, 1], [], []>} : vector<16x47xbf16>, vector<47x128xbf16>, vector<16x128xf32> -> vector<16x128xf32>
    %c0_3 = arith.constant 0 : index
    %c0_4 = arith.constant 0 : index
    %4 = vector.load %arg3[%c0_3, %c0_4] : memref<1x128xf32, #tpu.memory_space<vmem>>, vector<1x128xf32>
    %5 = vector.broadcast %4 : vector<1x128xf32> to vector<16x128xf32>
    %6 = arith.addf %3, %5 : vector<16x128xf32>
    %7 = arith.mulf %6, %6 : vector<16x128xf32>
    %8 = arith.mulf %6, %7 : vector<16x128xf32>
    %cst_5 = arith.constant 4.471500e-02 : f32
    %9 = vector.broadcast %cst_5 : f32 to vector<16x128xf32>
    %10 = arith.mulf %9, %8 : vector<16x128xf32>
    %11 = arith.addf %6, %10 : vector<16x128xf32>
    %cst_6 = arith.constant 0.797884583 : f32
    %12 = vector.broadcast %cst_6 : f32 to vector<16x128xf32>
    %13 = arith.mulf %12, %11 : vector<16x128xf32>
    %14 = math.tanh %13 : vector<16x128xf32>
    %cst_7 = arith.constant 1.000000e+00 : f32
    %15 = vector.broadcast %cst_7 : f32 to vector<16x128xf32>
    %16 = arith.addf %15, %14 : vector<16x128xf32>
    %cst_8 = arith.constant 5.000000e-01 : f32
    %17 = vector.broadcast %cst_8 : f32 to vector<16x128xf32>
    %18 = arith.mulf %17, %16 : vector<16x128xf32>
    %19 = arith.mulf %6, %18 : vector<16x128xf32>
    %20 = arith.truncf %19 : vector<16x128xf32> to vector<16x128xbf16>
    %c0_9 = arith.constant 0 : index
    %c0_10 = arith.constant 0 : index
    %21 = vector.load %arg4[%c0_9, %c0_10] : memref<128x128xbf16, #tpu.memory_space<vmem>>, vector<128x128xbf16>
    %cst_11 = arith.constant dense<0.000000e+00> : vector<16x128xf32>
    %22 = tpu.matmul %20, %21, %cst_11 {dimension_numbers = #tpu.dot_dimension_numbers<[1], [0], [0], [1], [0, 0, 1, 1], [], []>} : vector<16x128xbf16>, vector<128x128xbf16>, vector<16x128xf32> -> vector<16x128xf32>
    %c0_12 = arith.constant 0 : index
    %c0_13 = arith.constant 0 : index
    %23 = vector.load %arg5[%c0_12, %c0_13] : memref<1x128xf32, #tpu.memory_space<vmem>>, vector<1x128xf32>
    %24 = vector.broadcast %23 : vector<1x128xf32> to vector<16x128xf32>
    %25 = arith.addf %22, %24 : vector<16x128xf32>
    %c0_14 = arith.constant 0 : index
    %c0_15 = arith.constant 0 : index
    %26 = vector.load %arg6[%c0_14, %c0_15] : memref<16x128xf32, #tpu.memory_space<vmem>>, vector<16x128xf32>
    tpu.vector_store %arg6[%c0_14, %c0_15], %25 {strides = array<i32>} : memref<16x128xf32, #tpu.memory_space<vmem>>, vector<16x128xf32>,
    return
  }
  func.func @transform_0(%arg0: i32) -> (i32, i32) {
    %c0_i32 = arith.constant 0 : i32
    %c0_i32_0 = arith.constant 0 : i32
    return %arg0, %c0_i32 : i32, i32
  }
  func.func @transform_1(%arg0: i32) -> (i32, i32) {
    %c0_i32 = arith.constant 0 : i32
    %c0_i32_0 = arith.constant 0 : i32
    %c0_i32_1 = arith.constant 0 : i32
    return %c0_i32, %c0_i32_0 : i32, i32
  }
  func.func @transform_2(%arg0: i32) -> (i32, i32) {
    %c0_i32 = arith.constant 0 : i32
    %c0_i32_0 = arith.constant 0 : i32
    %c0_i32_1 = arith.constant 0 : i32
    return %c0_i32, %c0_i32_0 : i32, i32
  }
  func.func @transform_3(%arg0: i32) -> (i32, i32) {
    %c0_i32 = arith.constant 0 : i32
    %c0_i32_0 = arith.constant 0 : i32
    %c0_i32_1 = arith.constant 0 : i32
    return %c0_i32, %c0_i32_0 : i32, i32
  }
  func.func @transform_4(%arg0: i32) -> (i32, i32) {
    %c0_i32 = arith.constant 0 : i32
    %c0_i32_0 = arith.constant 0 : i32
    %c0_i32_1 = arith.constant 0 : i32
    return %c0_i32, %c0_i32_0 : i32, i32
  }
  func.func @transform_5(%arg0: i32) -> (i32, i32) {
    %c0_i32 = arith.constant 0 : i32
    %c0_i32_0 = arith.constant 0 : i32
    return %arg0, %c0_i32 : i32, i32
  }
}

</mosaic_0001>

<llo_original>
// kernel: motion_encoder_forward.1
$region0: #{motion_encoder_forward.1}
  #allocation0 [shape = 'u32[]', space=smem, size = 0x4, offset = 0x4, fixed_abs, tag = 'smem constant byte address 0x4 - core index']
  #allocation1 [shape = 'u32[144,128]{1,0:T(1,128)}', space=vmem, size = 0x12000, scoped, tag = 'internal scratch']
  %s0 = inlined_call_operand.hbm [shape: f32[16,47], index: 0, kind: input, shape index: {}]
  %s1 = inlined_call_operand.hbm [shape: bf16[47,128], index: 1, kind: input, shape index: {}]
  %s2 = inlined_call_operand.vmem [shape: f32[1,128], index: 2, kind: input, shape index: {}]
  %s3 = inlined_call_operand.hbm [shape: bf16[128,128], index: 3, kind: input, shape index: {}]
  %s4 = inlined_call_operand.vmem [shape: f32[1,128], index: 4, kind: input, shape index: {}]
  %s5 = inlined_call_operand.vmem [shape: f32[16,128], index: 5, kind: output, shape index: {}]
  %s6 = sld [smem:[#allocation0]]
  $region42: #{motion_encoder_forward.1} parent=0
    _
  %s8 = ssub.s32 1, %s6
  %s9 = scalar_select 0, %s8, %s6
  $region1: #{motion_encoder_forward.1} parent=0
    #allocation2 [shape = 'u8[8192]{0}', space=vmem, size = 0x2000, scoped, tag = 'input window, operand 0, single buffered']
    #allocation3 [shape = 's32[1]{0}', space=sflag, size = 0x4, scoped, tag = 'scoped memory for motion_encoder_forward.1']
    #allocation4 [shape = 'u8[12288]{0}', space=vmem, size = 0x3000, scoped, tag = 'input window, operand 1, single buffered']
    #allocation5 [shape = 's32[1]{0}', space=sflag, size = 0x4, scoped, tag = 'scoped memory for motion_encoder_forward.1']
    #allocation6 [shape = 'u8[32768]{0}', space=vmem, size = 0x8000, scoped, tag = 'input window, operand 3, single buffered']
    %10 = vsyncpa [#allocation3], 0
    %11 = vsyncpa [#allocation5], 0
    // Predicated region
    $region2: #{motion_encoder_forward.1} parent=1 // pred_check
      _
    $region3: #{motion_encoder_forward.1} parent=1 // pred_check_branch
      %13 = sbr.rel (0) target = $region5
    $region4: #{motion_encoder_forward.1} parent=1 // pred_region
      %s15 = ssub.s32 256, 256
      %16 = vsyncadd [#allocation3], %s15
      %s17 = sshll.u32 [#allocation2], 4
      %s18 = int_to_ptr.vmem [resolvable:$true] %s17
      %23 = dma.hbm_to_vmem [thread:$0]  %s0, 256, %s18, [#allocation3], 128, 128, 8
    $region5: #{motion_encoder_forward.1} parent=1 // pred_fallthru
      _
    // Predicated region
    $region6: #{motion_encoder_forward.1} parent=1 // pred_check
      _
    $region7: #{motion_encoder_forward.1} parent=1 // pred_check_branch
      %25 = sbr.rel (0) target = $region9
    $region8: #{motion_encoder_forward.1} parent=1 // pred_region
      %s27 = ssub.s32 384, 384
      %28 = vsyncadd [#allocation5], %s27
      %s29 = sshll.u32 [#allocation4], 4
      %s30 = int_to_ptr.vmem [resolvable:$true] %s29
      %35 = dma.hbm_to_vmem [thread:$0]  %s1, 384, %s30, [#allocation5], 64, 64, 4
    $region9: #{motion_encoder_forward.1} parent=1 // pred_fallthru
      _
    // Predicated region
    $region10: #{motion_encoder_forward.1} parent=1 // pred_check
      _
    $region11: #{motion_encoder_forward.1} parent=1 // pred_check_branch
      %37 = sbr.rel (0) target = $region13
    $region12: #{motion_encoder_forward.1} parent=1 // pred_region
      _
    $region13: #{motion_encoder_forward.1} parent=1 // pred_fallthru
      _
    // Predicated region
    $region14: #{motion_encoder_forward.1} parent=1 // pred_check
      _
    $region15: #{motion_encoder_forward.1} parent=1 // pred_check_branch
      %39 = sbr.rel (0) target = $region17
    $region16: #{motion_encoder_forward.1} parent=1 // pred_region
      %s41 = ssub.s32 1024, 1024
      %42 = vsyncadd [#allocation5], %s41
      %s43 = sshll.u32 [#allocation6], 4
      %s44 = int_to_ptr.vmem [resolvable:$true] %s43
      %49 = dma.hbm_to_vmem [thread:$0]  %s3, 1024, %s44, [#allocation5], 64, 64, 4
    $region17: #{motion_encoder_forward.1} parent=1 // pred_fallthru
      _
    // Predicated region
    $region18: #{motion_encoder_forward.1} parent=1 // pred_check
      _
    $region19: #{motion_encoder_forward.1} parent=1 // pred_check_branch
      %51 = sbr.rel (0) target = $region21
    $region20: #{motion_encoder_forward.1} parent=1 // pred_region
      _
    $region21: #{motion_encoder_forward.1} parent=1 // pred_fallthru
      _
    // Predicated region
    $region22: #{motion_encoder_forward.1} parent=1 // pred_check
      _
    $region23: #{motion_encoder_forward.1} parent=1 // pred_check_branch
      %53 = sbr.rel (0) target = $region25
    $region24: #{motion_encoder_forward.1} parent=1 // pred_region
      %54 = dma.done [#allocation3], 256
    $region25: #{motion_encoder_forward.1} parent=1 // pred_fallthru
      _
    // Predicated region
    $region26: #{motion_encoder_forward.1} parent=1 // pred_check
      _
    $region27: #{motion_encoder_forward.1} parent=1 // pred_check_branch
      %56 = sbr.rel (0) target = $region29
    $region28: #{motion_encoder_forward.1} parent=1 // pred_region
      %57 = dma.done [#allocation5], 384
    $region29: #{motion_encoder_forward.1} parent=1 // pred_fallthru
      _
    // Predicated region
    $region30: #{motion_encoder_forward.1} parent=1 // pred_check
      _
    $region31: #{motion_encoder_forward.1} parent=1 // pred_check_branch
      %59 = sbr.rel (0) target = $region33
    $region32: #{motion_encoder_forward.1} parent=1 // pred_region
      %60 = dma.done [#allocation5], 1024
    $region33: #{motion_encoder_forward.1} parent=1 // pred_fallthru
      _
    %v62 = vld [vmem:[#allocation2] sm:$0xff]
    %v63 = vld [vmem:[#allocation2 + $0x8] sm:$0xff]
    %v64 = vpack.c.bf16 %v63, %v62
    %v65 = vld [vmem:[#allocation4] sm:$0xf]
    %v66 = vld [vmem:[#allocation4 + $0x4] sm:$0xf]
    %v67 = vld [vmem:[#allocation4 + $0x8] sm:$0xf]
    %v68 = vld [vmem:[#allocation4 + $0xc] sm:$0xf]
    %v69 = vld [vmem:[#allocation4 + $0x10] sm:$0xf]
    %v70 = vld [vmem:[#allocation4 + $0x14] sm:$0xf]
    %v71 = vld [vmem:[%s2] sm:$0x1]
    %v73 = vlaneseq
    %v74 = vshrl.u32 %v73, 7
    %v75 = vsub.s32 0, %v74
    %v76 = vrot.slane %v71, %v75
    %v84 = vunpack.c.l.b16 %v65
    %v85 = vunpack.c.l.b16 %v66
    %v86 = vunpack.c.l.b16 %v67
    %v87 = vunpack.c.l.b16 %v68
    %v88 = vunpack.c.l.b16 %v69
    %v89 = vunpack.c.l.b16 %v70
    %v90 = vpack.c.b16 %v85, %v84
    %v91 = vpack.c.b16 %v87, %v86
    %v92 = vpack.c.b16 %v89, %v88
    %vm95 = vcmask 384000
    %v97 = vsel %vm95, %v64, 0
    %vm99 = vcmask 1046528
    %vm100 = vcmask 1047552
    %v101 = vsel %vm99, 4294967295, 65535
    %v102 = vsel %vm100, %v101, 0
    %v104 = vand.u32 %v92, %v102
    %106 = vmatprep.subr.bf16.mxu0 0
    %107 = vmatpush1.bf16.msra.mxu0 %v90
    %108 = vmatprep.subr.bf16.mxu0 0
    %109 = vmatpush1.bf16.msra.mxu0 %v91
    %110 = vmatprep.subr.bf16.mxu0 0
    %111 = vmatpush1.bf16.msra.mxu0 %v104
    %112 = vmatprep.subr.bf16.mxu0 0
    %113 = vmatpush1.bf16.msra.mxu0 0
    %114 = vmatprep.subr.bf16.mxu0 0
    %115 = vmatpush1.bf16.msra.mxu0 0
    %116 = vmatprep.subr.bf16.mxu0 0
    %117 = vmatpush1.bf16.msra.mxu0 0
    %118 = vmatprep.subr.bf16.mxu0 0
    %119 = vmatpush1.bf16.msra.mxu0 0
    %120 = vmatprep.subr.bf16.mxu0 0
    %121 = vmatpush1.bf16.msra.mxu0 0
    %122 = vmatprep.subr.bf16.mxu0 0
    %123 = vmatpush1.bf16.msra.mxu0 0
    %124 = vmatprep.subr.bf16.mxu0 0
    %125 = vmatpush1.bf16.msra.mxu0 0
    %126 = vmatprep.subr.bf16.mxu0 0
    %127 = vmatpush1.bf16.msra.mxu0 0
    %128 = vmatprep.subr.bf16.mxu0 0
    %129 = vmatpush1.bf16.msra.mxu0 0
    %130 = vmatprep.subr.bf16.mxu0 0
    %131 = vmatpush1.bf16.msra.mxu0 0
    %132 = vmatprep.subr.bf16.mxu0 0
    %133 = vmatpush1.bf16.msra.mxu0 0
    %134 = vmatprep.subr.bf16.mxu0 0
    %135 = vmatpush1.bf16.msra.mxu0 0
    %136 = vmatprep.subr.bf16.mxu0 0
    %137 = vmatpush1.bf16.msra.mxu0 0
    %138 = vmatprep.mubr.bf16.mxu0 0
    %139 = vmatmul.mubr.bf16.gmra.mrb[0].mxu0 %v97
    %v140 = vpop.f32.mrb[0].mxu0
    %v141 = vadd.f32 %v76, %v140
    %v142 = vpop.f32.mrb[0].mxu0
    %v143 = vpop.f32.mrb[0].mxu0
    %v144 = vadd.f32 %v76, %v143
    %v145 = vpop.f32.mrb[0].mxu0
    %146 = vdwg.mxu0
    %v147 = vmul.f32 %v141, %v141
    %v148 = vmul.f32 %v144, %v144
    %v149 = vmul.f32 %v141, %v147
    %v150 = vmul.f32 %v144, %v148
    %v151 = vmul.f32 %v149, 0.044715
    %v152 = vmul.f32 %v150, 0.044715
    %v153 = vadd.f32 %v141, %v151
    %v154 = vadd.f32 %v144, %v152
    %v155 = vmul.f32 %v153, 0.7978846
    %v156 = vmul.f32 %v154, 0.7978846
    %v157 = vtanh.pop %v155
    %v158 = vtanh.pop %v156
    %v159 = vadd.f32 %v157, 1.0
    %v160 = vadd.f32 %v158, 1.0
    %v161 = vmul.f32 %v159, 0.5
    %v162 = vmul.f32 %v160, 0.5
    %v163 = vmul.f32 %v141, %v161
    %v164 = vmul.f32 %v144, %v162
    %v165 = vpack.c.bf16 %v164, %v163
    %v166 = vld [vmem:[#allocation6] sm:$0xf]
    %v167 = vld [vmem:[#allocation6 + $0x4] sm:$0xf]
    %v168 = vld [vmem:[#allocation6 + $0x8] sm:$0xf]
    %v169 = vld [vmem:[#allocation6 + $0xc] sm:$0xf]
    %v170 = vld [vmem:[#allocation6 + $0x10] sm:$0xf]
    %v171 = vld [vmem:[#allocation6 + $0x14] sm:$0xf]
    %v172 = vld [vmem:[#allocation6 + $0x18] sm:$0xf]
    %v173 = vld [vmem:[#allocation6 + $0x1c] sm:$0xf]
    %v174 = vld [vmem:[#allocation6 + $0x20] sm:$0xf]
    %v175 = vld [vmem:[#allocation6 + $0x24] sm:$0xf]
    %v176 = vld [vmem:[#allocation6 + $0x28] sm:$0xf]
    %v177 = vld [vmem:[#allocation6 + $0x2c] sm:$0xf]
    %v178 = vld [vmem:[#allocation6 + $0x30] sm:$0xf]
    %v179 = vld [vmem:[#allocation6 + $0x34] sm:$0xf]
    %v180 = vld [vmem:[#allocation6 + $0x38] sm:$0xf]
    %v181 = vld [vmem:[#allocation6 + $0x3c] sm:$0xf]
    %v182 = vld [vmem:[%s4] sm:$0x1]
    %v184 = vlaneseq
    %v185 = vshrl.u32 %v184, 7
    %v186 = vsub.s32 0, %v185
    %v187 = vrot.slane %v182, %v186
    %v205 = vunpack.c.l.b16 %v166
    %v206 = vunpack.c.l.b16 %v167
    %v207 = vunpack.c.l.b16 %v168
    %v208 = vunpack.c.l.b16 %v169
    %v209 = vunpack.c.l.b16 %v170
    %v210 = vunpack.c.l.b16 %v171
    %v211 = vunpack.c.l.b16 %v172
    %v212 = vunpack.c.l.b16 %v173
    %v213 = vunpack.c.l.b16 %v174
    %v214 = vunpack.c.l.b16 %v175
    %v215 = vunpack.c.l.b16 %v176
    %v216 = vunpack.c.l.b16 %v177
    %v217 = vunpack.c.l.b16 %v178
    %v218 = vunpack.c.l.b16 %v179
    %v219 = vunpack.c.l.b16 %v180
    %v220 = vunpack.c.l.b16 %v181
    %v221 = vpack.c.b16 %v206, %v205
    %v222 = vpack.c.b16 %v208, %v207
    %v223 = vpack.c.b16 %v210, %v209
    %v224 = vpack.c.b16 %v212, %v211
    %v225 = vpack.c.b16 %v214, %v213
    %v226 = vpack.c.b16 %v216, %v215
    %v227 = vpack.c.b16 %v218, %v217
    %v228 = vpack.c.b16 %v220, %v219
    %237 = vmatprep.subr.bf16.mxu0 0
    %238 = vmatpush1.bf16.msra.mxu0 %v221
    %239 = vmatprep.subr.bf16.mxu0 0
    %240 = vmatpush1.bf16.msra.mxu0 %v222
    %241 = vmatprep.subr.bf16.mxu0 0
    %242 = vmatpush1.bf16.msra.mxu0 %v223
    %243 = vmatprep.subr.bf16.mxu0 0
    %244 = vmatpush1.bf16.msra.mxu0 %v224
    %245 = vmatprep.subr.bf16.mxu0 0
    %246 = vmatpush1.bf16.msra.mxu0 %v225
    %247 = vmatprep.subr.bf16.mxu0 0
    %248 = vmatpush1.bf16.msra.mxu0 %v226
    %249 = vmatprep.subr.bf16.mxu0 0
    %250 = vmatpush1.bf16.msra.mxu0 %v227
    %251 = vmatprep.subr.bf16.mxu0 0
    %252 = vmatpush1.bf16.msra.mxu0 %v228
    %253 = vmatprep.subr.bf16.mxu0 0
    %254 = vmatpush1.bf16.msra.mxu0 0
    %255 = vmatprep.subr.bf16.mxu0 0
    %256 = vmatpush1.bf16.msra.mxu0 0
    %257 = vmatprep.subr.bf16.mxu0 0
    %258 = vmatpush1.bf16.msra.mxu0 0
    %259 = vmatprep.subr.bf16.mxu0 0
    %260 = vmatpush1.bf16.msra.mxu0 0
    %261 = vmatprep.subr.bf16.mxu0 0
    %262 = vmatpush1.bf16.msra.mxu0 0
    %263 = vmatprep.subr.bf16.mxu0 0
    %264 = vmatpush1.bf16.msra.mxu0 0
    %265 = vmatprep.subr.bf16.mxu0 0
    %266 = vmatpush1.bf16.msra.mxu0 0
    %267 = vmatprep.subr.bf16.mxu0 0
    %268 = vmatpush1.bf16.msra.mxu0 0
    %269 = vmatprep.mubr.bf16.mxu0 0
    %270 = vmatmul.mubr.bf16.gmra.mrb[0].mxu0 %v165
    %v271 = vpop.f32.mrb[0].mxu0
    %v272 = vadd.f32 %v187, %v271
    %v273 = vpop.f32.mrb[0].mxu0
    %v274 = vpop.f32.mrb[0].mxu0
    %v275 = vadd.f32 %v187, %v274
    %v276 = vpop.f32.mrb[0].mxu0
    %277 = vdwg.mxu0
    %278 = vst [vmem:[%s5] sm:$0xff] %v272
    %279 = vst [vmem:[%s5 + $0x8] sm:$0xff] %v275
    // Predicated region
    $region34: #{motion_encoder_forward.1} parent=1 // pred_check
      _
    $region35: #{motion_encoder_forward.1} parent=1 // pred_check_branch
      %281 = sbr.rel (0) target = $region37
    $region36: #{motion_encoder_forward.1} parent=1 // pred_region
      _
    $region37: #{motion_encoder_forward.1} parent=1 // pred_fallthru
      _
    // Predicated region
    $region38: #{motion_encoder_forward.1} parent=1 // pred_check
      _
    $region39: #{motion_encoder_forward.1} parent=1 // pred_check_branch
      %283 = sbr.rel (0) target = $region41
    $region40: #{motion_encoder_forward.1} parent=1 // pred_region
      _
    $region41: #{motion_encoder_forward.1} parent=1 // pred_fallthru
      _
    %284 = vsyncpa [#allocation3], 1
    %285 = vsyncpa [#allocation5], 1

</llo_original>
